<compile_context>
chip_gen: v7x
topology: tpu7x:2x2x1
jax: 0.10.0
libtpu: 0.0.40
codegen_flags: <defaults>
</compile_context>

<pallas_src>
import functools

import jax
import jax.numpy as jnp
from jax import lax
from jax.experimental import pallas as pl
from jax.experimental.pallas import tpu as pltpu


def _round_up(x, m):
    return (x + m - 1) // m * m


# --------------------------------------------------------------------------- #
# Fast path: fully fused single kernel for small N (typical module batch sizes).
# --------------------------------------------------------------------------- #
def _fused_small_kernel(p_ref, t_ref, o_ref, *, shift, n):
    p = p_ref[...].astype(jnp.float32)                        # [n, d]
    t = t_ref[...].astype(jnp.float32)                        # [n, d]
    eps2 = jnp.float32(1e-16)
    p_n = p * (lax.rsqrt(jnp.maximum(jnp.sum(p * p, -1, keepdims=True), eps2))
               * jnp.float32(shift))
    t_n = t * lax.rsqrt(jnp.maximum(jnp.sum(t * t, -1, keepdims=True), eps2))
    # scaled_sim[r, c] = cos(p_r, t_c) * 0.5/T ; contract last dims (no transpose).
    s = lax.dot_general(p_n, t_n, (((1,), (1,)), ((), ())),
                        preferred_element_type=jnp.float32)   # [n, n]
    e = jnp.exp(s - jnp.float32(shift))                       # constant-shift softmax
    denom = jnp.sum(e, axis=-1, keepdims=True)                # [n, 1]
    rows = lax.broadcasted_iota(jnp.int32, s.shape, 0)
    cols = lax.broadcasted_iota(jnp.int32, s.shape, 1)
    diag = jnp.sum(jnp.where(rows == cols, s, 0.0), axis=-1, keepdims=True)
    # loss_i = logsumexp_j - diag ; the +1/(2T) affine constant cancels exactly.
    per_row = jnp.float32(shift) + jnp.log(denom) - diag      # [n, 1]
    o_ref[...] = jnp.sum(per_row, axis=0, keepdims=True) * jnp.float32(1.0 / n)


def _fused_small(p, t, shift):
    n, _ = p.shape
    kernel = functools.partial(_fused_small_kernel, shift=float(shift), n=n)
    out = pl.pallas_call(
        kernel,
        out_shape=jax.ShapeDtypeStruct((1, 1), jnp.float32),
    )(p, t)
    return out[0, 0]


# --------------------------------------------------------------------------- #
# Prologue (large-N path): row-wise L2 normalization of t, emitted in bf16.
# --------------------------------------------------------------------------- #
def _normalize_kernel(x_ref, o_ref):
    x = x_ref[...].astype(jnp.float32)
    inv = lax.rsqrt(jnp.maximum(jnp.sum(x * x, -1, keepdims=True),
                                jnp.float32(1e-16)))
    o_ref[...] = (x * inv).astype(o_ref.dtype)


def _normalize(x_pad, *, out_dtype, block_rows):
    n_pad, d_pad = x_pad.shape
    return pl.pallas_call(
        _normalize_kernel,
        out_shape=jax.ShapeDtypeStruct((n_pad, d_pad), out_dtype),
        grid_spec=pltpu.PrefetchScalarGridSpec(
            num_scalar_prefetch=0,
            grid=(n_pad // block_rows,),
            in_specs=[pl.BlockSpec((block_rows, d_pad), lambda i: (i, 0))],
            out_specs=pl.BlockSpec((block_rows, d_pad), lambda i: (i, 0)),
        ),
        compiler_params=pltpu.CompilerParams(dimension_semantics=("parallel",)),
    )(x_pad)


# --------------------------------------------------------------------------- #
# Main kernel (large-N path): tiled online sum-of-exp + diagonal from the s tile.
# --------------------------------------------------------------------------- #
def _contrastive_tile_kernel(p_ref, t_ref, o_ref, p_nrm, l_acc, d_acc, *,
                             shift, n_valid, block_i, block_j, mask_last):
    i = pl.program_id(0)
    j = pl.program_id(1)
    nj = pl.num_programs(1)

    @pl.when(j == 0)
    def _():
        # Normalize the resident p row tile once per i-band, fold the 0.5/T scale,
        # and emit it in the MXU streaming dtype (bf16 by default).
        p = p_ref[...].astype(jnp.float32)
        inv = lax.rsqrt(jnp.maximum(jnp.sum(p * p, -1, keepdims=True),
                                    jnp.float32(1e-16)))
        p_nrm[...] = (p * (inv * jnp.float32(shift))).astype(p_nrm.dtype)
        l_acc[...] = jnp.zeros_like(l_acc)
        d_acc[...] = jnp.zeros_like(d_acc)

    # [block_i, block_j] scaled cosine sims; contract last dims of both operands
    # (no transpose of t materialized); f32 accumulation on the MXU.
    s = lax.dot_general(p_nrm[...], t_ref[...],
                        dimension_numbers=(((1,), (1,)), ((), ())),
                        preferred_element_type=jnp.float32)

    # Constant shift (= max possible scaled sim) keeps exp <= 1: no running max.
    e = jnp.exp(s - jnp.float32(shift))

    if mask_last:
        # Padded t columns exist only in the last j tile; gate the mask there.
        @pl.when(j == nj - 1)
        def _():
            col = j * block_j + lax.broadcasted_iota(jnp.int32, e.shape, 1)
            l_acc[...] += jnp.sum(jnp.where(col < n_valid, e, 0.0),
                                  axis=-1, keepdims=True)

        @pl.when(j != nj - 1)
        def _():
            l_acc[...] += jnp.sum(e, axis=-1, keepdims=True)
    else:
        l_acc[...] += jnp.sum(e, axis=-1, keepdims=True)

    # Diagonal terms: read them out of the f32 s tile the MXU already produced,
    # only on the tiles that intersect the global diagonal.
    diag_here = jnp.logical_and(j * block_j < (i + 1) * block_i,
                                i * block_i < (j + 1) * block_j)

    @pl.when(diag_here)
    def _():
        row_g = i * block_i + lax.broadcasted_iota(jnp.int32, s.shape, 0)
        col_g = j * block_j + lax.broadcasted_iota(jnp.int32, s.shape, 1)
        d_acc[...] += jnp.sum(jnp.where(row_g == col_g, s, 0.0),
                              axis=-1, keepdims=True)

    @pl.when(j == nj - 1)
    def _():
        # loss_i = logsumexp_j(scaled_sim) - scaled_sim_ii (affine constant cancels)
        o_ref[...] = jnp.float32(shift) + jnp.log(l_acc[...]) - d_acc[...]


# --------------------------------------------------------------------------- #
# Tile-size heuristics.
# --------------------------------------------------------------------------- #
def _pick_block_i(d_pad, in_bytes, stream_bytes, block_j,
                  budget_bytes=20 * 1024 * 1024):
    """Largest row tile whose VMEM footprint (raw p double-buffered + bf16 p scratch
    + bf16 t double-buffered + f32 s tile + accumulators) fits the budget."""
    fixed = 2 * block_j * d_pad * stream_bytes
    for cand in (1024, 768, 512, 384, 256, 128, 64, 32, 16, 8):
        per = cand * (d_pad * (2 * in_bytes + stream_bytes) + 4 * block_j + 16)
        if fixed + per <= budget_bytes:
            return cand
    return 8


def _prologue_rows(n_pad, unit, cap=1024):
    """Largest power-of-two multiple of `unit` that divides n_pad and is <= cap."""
    best = unit
    m = unit
    while m * 2 <= min(cap, n_pad):
        m *= 2
        if n_pad % m == 0:
            best = m
    return best


# --------------------------------------------------------------------------- #
# Public wrapper.
# --------------------------------------------------------------------------- #
def cosine_contrastive_loss(projected_proteins, projected_tokens, *,
                            temperature=0.5, num_negatives=None, lambdaa=1.0,
                            margin=0.0, block_i=None, block_j=None,
                            stream_dtype=jnp.bfloat16, force_tiled=False):
    """Pallas TPU implementation of CosineContrastiveLoss.forward.

    num_negatives / lambdaa / margin are accepted for interface parity but, exactly
    like the reference forward pass, are not used.
    """
    assert projected_proteins.shape == projected_tokens.shape, \
        "Mismatch in number of protein and token representations"
    n, d = projected_proteins.shape
    shift = 0.5 / float(temperature)

    rn, rd = _round_up(n, 8), _round_up(d, 128)
    small_bytes = 2 * rn * rd * 4 + 2 * rn * rn * 4
    if (not force_tiled and block_i is None and block_j is None
            and n <= 256 and small_bytes <= 12 * 1024 * 1024):
        return _fused_small(projected_proteins, projected_tokens, shift)

    # ---------------- tiled (large-N) path ----------------
    in_bytes = jnp.dtype(projected_proteins.dtype).itemsize
    st_bytes = jnp.dtype(stream_dtype).itemsize
    d_pad = rd

    if block_j is None:
        block_j = min(256, _round_up(n, 8))        # MXU-aligned column tile
    assert block_j % 8 == 0
    if block_i is None:
        block_i = _pick_block_i(d_pad, in_bytes, st_bytes, block_j)
        # Keep >= 2 row tiles so both v7x TensorCores get work on the parallel axis.
        block_i = min(block_i, max(8, _round_up((n + 1) // 2, 8)))
    assert block_i % 8 == 0

    n_pad_i = _round_up(n, block_i)
    n_pad_j = _round_up(n, block_j)

    p_pad = jnp.pad(projected_proteins, ((0, n_pad_i - n), (0, d_pad - d)))
    t_pad = jnp.pad(projected_tokens, ((0, n_pad_j - n), (0, d_pad - d)))

    # t is the re-streamed operand: normalize it once, emit in bf16 (half HBM traffic).
    t_norm = _normalize(t_pad, out_dtype=stream_dtype,
                        block_rows=_prologue_rows(n_pad_j, block_j))

    num_i = n_pad_i // block_i
    num_j = n_pad_j // block_j
    kernel = functools.partial(
        _contrastive_tile_kernel, shift=shift, n_valid=n,
        block_i=block_i, block_j=block_j, mask_last=(n % block_j != 0))

    cost = pl.CostEstimate(
        flops=2 * n_pad_i * n_pad_j * d_pad,
        transcendentals=n_pad_i * n_pad_j,
        bytes_accessed=(n_pad_i * d_pad * in_bytes            # p read once
                        + num_i * n_pad_j * d_pad * st_bytes  # t re-streamed
                        + n_pad_i * 4),                       # per-row output
    )

    per_row = pl.pallas_call(
        kernel,
        out_shape=jax.ShapeDtypeStruct((n_pad_i, 1), jnp.float32),
        grid_spec=pltpu.PrefetchScalarGridSpec(
            num_scalar_prefetch=0,
            grid=(num_i, num_j),
            in_specs=[
                pl.BlockSpec((block_i, d_pad), lambda i, j: (i, 0)),  # p row tile
                pl.BlockSpec((block_j, d_pad), lambda i, j: (j, 0)),  # t col tile
            ],
            out_specs=pl.BlockSpec((block_i, 1), lambda i, j: (i, 0)),
            scratch_shapes=[
                pltpu.VMEM((block_i, d_pad), stream_dtype),  # normalized+scaled p
                pltpu.VMEM((block_i, 1), jnp.float32),       # running sum of exp
                pltpu.VMEM((block_i, 1), jnp.float32),       # diagonal scaled sim
            ],
        ),
        compiler_params=pltpu.CompilerParams(
            dimension_semantics=("parallel", "arbitrary"),
            vmem_limit_bytes=48 * 1024 * 1024,
        ),
        cost_estimate=cost,
    )(p_pad, t_norm)

    # Mean over the true (unpadded) rows.
    return jnp.mean(per_row[:n, 0])


# --------------------------------------------------------------------------- #
# Pure-JAX reference mirroring the PyTorch loop, for sanity checking.
# --------------------------------------------------------------------------- #
def _reference(p, t, temperature):
    eps = 1e-8
    p = p.astype(jnp.float32)
    t = t.astype(jnp.float32)
    p_n = p / jnp.maximum(jnp.linalg.norm(p, axis=-1, keepdims=True), eps)
    t_n = t / jnp.maximum(jnp.linalg.norm(t, axis=-1, keepdims=True), eps)
    sim = (p_n @ t_n.T + 1.0) / 2.0
    e = jnp.exp(sim / temperature)
    return jnp.mean(-jnp.log(jnp.diag(e) / jnp.sum(e, axis=-1)))


if __name__ == "__main__":
    key = jax.random.PRNGKey(0)
    k1, k2, k3, k4 = jax.random.split(key, 4)
    temperature = 0.5

    # Case 1: small batch -> fully fused single-kernel fast path (typical usage).
    N1, D1 = 8, 32
    p1 = jax.random.normal(k1, (N1, D1), dtype=jnp.float32)
    t1 = jax.random.normal(k2, (N1, D1), dtype=jnp.float32)
    loss1 = jax.block_until_ready(
        cosine_contrastive_loss(p1, t1, temperature=temperature,
                                num_negatives=N1 - 1, lambdaa=1.0, margin=0.0))
    ref1 = _reference(p1, t1, temperature)
    assert jnp.allclose(loss1, ref1, rtol=1e-4, atol=1e-5), (loss1, ref1)

    # Case 2: non-aligned shapes forcing the tiled path with block_i != block_j,
    # multi-tile grid, row/column padding, last-tile column masking and a diagonal
    # spanning multiple j tiles.  f32 streaming -> tight tolerance check of the math.
    N2, D2 = 200, 72
    p2 = jax.random.normal(k3, (N2, D2), dtype=jnp.float32)
    t2 = jax.random.normal(k4, (N2, D2), dtype=jnp.float32)
    ref2 = _reference(p2, t2, temperature)
    loss2_f32 = jax.block_until_ready(
        cosine_contrastive_loss(p2, t2, temperature=temperature,
                                num_negatives=N2 - 1, lambdaa=1.0, margin=0.0,
                                block_i=128, block_j=64,
                                stream_dtype=jnp.float32))
    assert jnp.allclose(loss2_f32, ref2, rtol=1e-4, atol=1e-5), (loss2_f32, ref2)

    # Case 3: same shapes through the default bf16-streaming tiled path (the
    # production configuration); looser tolerance for bf16 operand rounding.
    loss2_bf16 = jax.block_until_ready(
        cosine_contrastive_loss(p2, t2, temperature=temperature,
                                num_negatives=N2 - 1, lambdaa=1.0, margin=0.0,
                                block_i=128, block_j=64))
    assert jnp.allclose(loss2_bf16, ref2, rtol=3e-3, atol=3e-3), (loss2_bf16, ref2)

    print("KERNEL_OK")
</pallas_src>

<mosaic_0001>
module attributes {stable_mosaic.version = 11 : i64} {
  func.func @_fused_small_kernel(%arg0: memref<8x32xf32, #tpu.memory_space<vmem>>, %arg1: memref<8x32xf32, #tpu.memory_space<vmem>>, %arg2: memref<1x1xf32, #tpu.memory_space<vmem>>) attributes {dimension_semantics = [], scalar_prefetch = 0 : i64, scratch_operands = 0 : i64, tpu.core_type = #tpu.core_type<tc>} {
    %c0 = arith.constant 0 : index
    %c0_0 = arith.constant 0 : index
    %0 = vector.load %arg0[%c0, %c0_0] : memref<8x32xf32, #tpu.memory_space<vmem>>, vector<8x32xf32>
    %c0_1 = arith.constant 0 : index
    %c0_2 = arith.constant 0 : index
    %1 = vector.load %arg1[%c0_1, %c0_2] : memref<8x32xf32, #tpu.memory_space<vmem>>, vector<8x32xf32>
    %2 = arith.mulf %0, %0 : vector<8x32xf32>
    %cst = arith.constant dense<0.000000e+00> : vector<8xf32>
    %3 = vector.multi_reduction <add>, %2, %cst [1] : vector<8x32xf32> to vector<8xf32>
    %4 = vector.shape_cast %3 : vector<8xf32> to vector<8x1xf32>
    %cst_3 = arith.constant 1.000000e-16 : f32
    %5 = vector.broadcast %cst_3 : f32 to vector<8x1xf32>
    %6 = arith.maximumf %4, %5 : vector<8x1xf32>
    %7 = math.rsqrt %6 : vector<8x1xf32>
    %cst_4 = arith.constant 1.000000e+00 : f32
    %8 = vector.broadcast %cst_4 : f32 to vector<8x1xf32>
    %9 = arith.mulf %7, %8 : vector<8x1xf32>
    %10 = vector.broadcast %9 : vector<8x1xf32> to vector<8x32xf32>
    %11 = arith.mulf %0, %10 : vector<8x32xf32>
    %12 = arith.mulf %1, %1 : vector<8x32xf32>
    %cst_5 = arith.constant dense<0.000000e+00> : vector<8xf32>
    %13 = vector.multi_reduction <add>, %12, %cst_5 [1] : vector<8x32xf32> to vector<8xf32>
    %14 = vector.shape_cast %13 : vector<8xf32> to vector<8x1xf32>
    %cst_6 = arith.constant 1.000000e-16 : f32
    %15 = vector.broadcast %cst_6 : f32 to vector<8x1xf32>
    %16 = arith.maximumf %14, %15 : vector<8x1xf32>
    %17 = math.rsqrt %16 : vector<8x1xf32>
    %18 = vector.broadcast %17 : vector<8x1xf32> to vector<8x32xf32>
    %19 = arith.mulf %1, %18 : vector<8x32xf32>
    %cst_7 = arith.constant dense<0.000000e+00> : vector<8x8xf32>
    %20 = tpu.matmul %11, %19, %cst_7 {dimension_numbers = #tpu.dot_dimension_numbers<[1], [1], [0], [0], [0, 0, 1, 0], [], []>} : vector<8x32xf32>, vector<8x32xf32>, vector<8x8xf32> -> vector<8x8xf32>
    %cst_8 = arith.constant 1.000000e+00 : f32
    %21 = vector.broadcast %cst_8 : f32 to vector<8x8xf32>
    %22 = arith.subf %20, %21 : vector<8x8xf32>
    %23 = math.exp %22 : vector<8x8xf32>
    %cst_9 = arith.constant dense<0.000000e+00> : vector<8xf32>
    %24 = vector.multi_reduction <add>, %23, %cst_9 [1] : vector<8x8xf32> to vector<8xf32>
    %25 = vector.shape_cast %24 : vector<8xf32> to vector<8x1xf32>
    %26 = tpu.iota {dimensions = array<i32: 0>} : vector<8x8xi32>
    %27 = tpu.iota {dimensions = array<i32: 1>} : vector<8x8xi32>
    %28 = arith.cmpi eq, %26, %27 : vector<8x8xi32>
    %cst_10 = arith.constant 0.000000e+00 : f32
    %29 = vector.broadcast %cst_10 : f32 to vector<8x8xf32>
    %30 = arith.select %28, %20, %29 : vector<8x8xi1>, vector<8x8xf32>
    %cst_11 = arith.constant dense<0.000000e+00> : vector<8xf32>
    %31 = vector.multi_reduction <add>, %30, %cst_11 [1] : vector<8x8xf32> to vector<8xf32>
    %32 = vector.shape_cast %31 : vector<8xf32> to vector<8x1xf32>
    %33 = math.log %25 : vector<8x1xf32>
    %cst_12 = arith.constant 1.000000e+00 : f32
    %34 = vector.broadcast %cst_12 : f32 to vector<8x1xf32>
    %35 = arith.addf %34, %33 : vector<8x1xf32>
    %36 = arith.subf %35, %32 : vector<8x1xf32>
    %cst_13 = arith.constant dense<0.000000e+00> : vector<1xf32>
    %37 = vector.multi_reduction <add>, %36, %cst_13 [0] : vector<8x1xf32> to vector<1xf32>
    %38 = vector.shape_cast %37 : vector<1xf32> to vector<1x1xf32>
    %cst_14 = arith.constant 1.250000e-01 : f32
    %39 = vector.broadcast %cst_14 : f32 to vector<1x1xf32>
    %40 = arith.mulf %38, %39 : vector<1x1xf32>
    %c0_15 = arith.constant 0 : index
    %c0_16 = arith.constant 0 : index
    %41 = vector.load %arg2[%c0_15, %c0_16] : memref<1x1xf32, #tpu.memory_space<vmem>>, vector<1x1xf32>
    tpu.vector_store %arg2[%c0_15, %c0_16], %40 {strides = array<i32>} : memref<1x1xf32, #tpu.memory_space<vmem>>, vector<1x1xf32>,
    return
  }
}

</mosaic_0001>

<llo_original>
// kernel: tpu_custom_call.1
$region0: #{tpu_custom_call.1}
  #allocation0 [shape = 'u32[]', space=smem, size = 0x4, offset = 0x4, fixed_abs, tag = 'smem constant byte address 0x4 - core index']
  #allocation1 [shape = 'u32[144,128]{1,0:T(1,128)}', space=vmem, size = 0x12000, scoped, tag = 'internal scratch']
  %s0 = inlined_call_operand.hbm [shape: f32[8,32], index: 0, kind: input, shape index: {}]
  %s1 = inlined_call_operand.hbm [shape: f32[8,32], index: 1, kind: input, shape index: {}]
  %s2 = inlined_call_operand.hbm [shape: f32[1,1], index: 2, kind: output, shape index: {}]
  %s3 = sld [smem:[#allocation0]]
  $region26: #{tpu_custom_call.1} parent=0
    _
  %s5 = ssub.s32 1, %s3
  %s6 = scalar_select 0, %s5, %s3
  $region1: #{tpu_custom_call.1} parent=0
    #allocation2 [shape = 'u8[4096]{0}', space=vmem, size = 0x1000, scoped, tag = 'input window, operand 0, single buffered']
    #allocation3 [shape = 's32[1]{0}', space=sflag, size = 0x4, scoped, tag = 'scoped memory for tpu_custom_call.1']
    #allocation4 [shape = 's32[1]{0}', space=sflag, size = 0x4, scoped, tag = 'scoped memory for tpu_custom_call.1']
    #allocation5 [shape = 'u8[4096]{0}', space=vmem, size = 0x1000, scoped, tag = 'input window, operand 1, single buffered']
    #allocation6 [shape = 's32[1]{0}', space=sflag, size = 0x4, scoped, tag = 'scoped memory for tpu_custom_call.1']
    #allocation7 [shape = 'u8[512]{0}', space=vmem, size = 0x400, scoped, tag = 'output window, operand 0, single buffered']
    %7 = vsyncpa [#allocation3], 0
    %8 = vsyncpa [#allocation6], 0
    %9 = vsyncpa [#allocation4], 0
    // Predicated region
    $region2: #{tpu_custom_call.1} parent=1 // pred_check
      _
    $region3: #{tpu_custom_call.1} parent=1 // pred_check_branch
      %11 = sbr.rel (0) target = $region5
    $region4: #{tpu_custom_call.1} parent=1 // pred_region
      %s13 = ssub.s32 128, 128
      %14 = vsyncadd [#allocation3], %s13
      %s16 = sshll.u32 [#allocation2], 4
      %s17 = int_to_ptr.vmem [resolvable:$true] %s16
      %19 = dma.hbm_to_vmem [thread:$0]  %s0, 128, %s17, [#allocation3]
    $region5: #{tpu_custom_call.1} parent=1 // pred_fallthru
      _
    // Predicated region
    $region6: #{tpu_custom_call.1} parent=1 // pred_check
      _
    $region7: #{tpu_custom_call.1} parent=1 // pred_check_branch
      %21 = sbr.rel (0) target = $region9
    $region8: #{tpu_custom_call.1} parent=1 // pred_region
      %s23 = ssub.s32 128, 128
      %24 = vsyncadd [#allocation6], %s23
      %s26 = sshll.u32 [#allocation5], 4
      %s27 = int_to_ptr.vmem [resolvable:$true] %s26
      %29 = dma.hbm_to_vmem [thread:$0]  %s1, 128, %s27, [#allocation6]
    $region9: #{tpu_custom_call.1} parent=1 // pred_fallthru
      _
    // Predicated region
    $region10: #{tpu_custom_call.1} parent=1 // pred_check
      _
    $region11: #{tpu_custom_call.1} parent=1 // pred_check_branch
      %31 = sbr.rel (0) target = $region13
    $region12: #{tpu_custom_call.1} parent=1 // pred_region
      %32 = dma.done [#allocation3], 128
    $region13: #{tpu_custom_call.1} parent=1 // pred_fallthru
      _
    // Predicated region
    $region14: #{tpu_custom_call.1} parent=1 // pred_check
      _
    $region15: #{tpu_custom_call.1} parent=1 // pred_check_branch
      %34 = sbr.rel (0) target = $region17
    $region16: #{tpu_custom_call.1} parent=1 // pred_region
      %35 = dma.done [#allocation6], 128
    $region17: #{tpu_custom_call.1} parent=1 // pred_fallthru
      _
    %v36 = vld [vmem:[#allocation2] sm:$0xff]
    %v37 = vld [vmem:[#allocation5] sm:$0xff]
    %v38 = vmul.f32 %v36, %v36
    %vm39 = vcmask 261120
    %v40 = vsel %vm39, %v38, 0.0
    %41 = vadd.xlane.f32.xlu0 %v40
    %v42 = vpop.xlane.xlu0 %41
    %v43 = vmax.f32 %v42, 1e-16
    %v44 = vrsqrt.pop %v43
    %v45 = vmul.f32 %v36, %v44
    %v46 = vmul.f32 %v37, %v37
    %v47 = vsel %vm39, %v46, 0.0
    %48 = vadd.xlane.f32.xlu0 %v47
    %v49 = vpop.xlane.xlu0 %48
    %v50 = vmax.f32 %v49, 1e-16
    %v51 = vrsqrt.pop %v50
    %v52 = vmul.f32 %v37, %v51
    %v54 = vsel %vm39, %v45, 0
    %v57 = vsel %vm39, %v52, 0
    %59 = vmatprep.subr.mxu0 0.0
    %60 = vmatpush1.xpose.msra.mxu0 %v57
    %61 = vmatprep.subr.mxu0 0.0
    %62 = vmatpush1.xpose.msra.mxu0 0.0
    %63 = vmatprep.subr.mxu0 0.0
    %64 = vmatpush1.xpose.msra.mxu0 0.0
    %65 = vmatprep.subr.mxu0 0.0
    %66 = vmatpush1.xpose.msra.mxu0 0.0
    %67 = vmatprep.subr.mxu0 0.0
    %68 = vmatpush1.xpose.msra.mxu0 0.0
    %69 = vmatprep.subr.mxu0 0.0
    %70 = vmatpush1.xpose.msra.mxu0 0.0
    %71 = vmatprep.subr.mxu0 0.0
    %72 = vmatpush1.xpose.msra.mxu0 0.0
    %73 = vmatprep.subr.mxu0 0.0
    %74 = vmatpush1.xpose.msra.mxu0 0.0
    %75 = vmatprep.subr.mxu0 0.0
    %76 = vmatpush1.xpose.msra.mxu0 0.0
    %77 = vmatprep.subr.mxu0 0.0
    %78 = vmatpush1.xpose.msra.mxu0 0.0
    %79 = vmatprep.subr.mxu0 0.0
    %80 = vmatpush1.xpose.msra.mxu0 0.0
    %81 = vmatprep.subr.mxu0 0.0
    %82 = vmatpush1.xpose.msra.mxu0 0.0
    %83 = vmatprep.subr.mxu0 0.0
    %84 = vmatpush1.xpose.msra.mxu0 0.0
    %85 = vmatprep.subr.mxu0 0.0
    %86 = vmatpush1.xpose.msra.mxu0 0.0
    %87 = vmatprep.subr.mxu0 0.0
    %88 = vmatpush1.xpose.msra.mxu0 0.0
    %89 = vmatprep.subr.mxu0 0.0
    %90 = vmatpush1.xpose.msra.mxu0 0.0
    %91 = vmatprep.subr.mxu0 0.0
    %92 = vmatpush1.xpose.msra.mxu0 0.0
    %93 = vmatprep.subr.mxu0 0.0
    %94 = vmatpush1.xpose.msra.mxu0 0.0
    %95 = vmatprep.subr.mxu0 0.0
    %96 = vmatpush1.xpose.msra.mxu0 0.0
    %97 = vmatprep.subr.mxu0 0.0
    %98 = vmatpush1.xpose.msra.mxu0 0.0
    %99 = vmatprep.subr.mxu0 0.0
    %100 = vmatpush1.xpose.msra.mxu0 0.0
    %101 = vmatprep.subr.mxu0 0.0
    %102 = vmatpush1.xpose.msra.mxu0 0.0
    %103 = vmatprep.subr.mxu0 0.0
    %104 = vmatpush1.xpose.msra.mxu0 0.0
    %105 = vmatprep.subr.mxu0 0.0
    %106 = vmatpush1.xpose.msra.mxu0 0.0
    %107 = vmatprep.subr.mxu0 0.0
    %108 = vmatpush1.xpose.msra.mxu0 0.0
    %109 = vmatprep.subr.mxu0 0.0
    %110 = vmatpush1.xpose.msra.mxu0 0.0
    %111 = vmatprep.subr.mxu0 0.0
    %112 = vmatpush1.xpose.msra.mxu0 0.0
    %113 = vmatprep.subr.mxu0 0.0
    %114 = vmatpush1.xpose.msra.mxu0 0.0
    %115 = vmatprep.subr.mxu0 0.0
    %116 = vmatpush1.xpose.msra.mxu0 0.0
    %117 = vmatprep.subr.mxu0 0.0
    %118 = vmatpush1.xpose.msra.mxu0 0.0
    %119 = vmatprep.subr.mxu0 0.0
    %120 = vmatpush1.xpose.msra.mxu0 0.0
    %121 = vmatprep.subr.mxu0 0.0
    %122 = vmatpush1.xpose.msra.mxu0 0.0
    %123 = vmatprep.mubr.f32.mxu0 0.0
    %124 = vmatmul.mubr.f32.gmra.mrb[0].mxu0 %v54
    %v125 = vpop.f32.mrb[0].mxu0
    %v126 = vadd.f32 0.0, %v125
    %v127 = vpop.f32.mrb[0].mxu0
    %128 = vdwg.mxu0
    %v129 = vsub.f32 %v126, 1.0
    %v130 = vmul.f32 %v129, 1.442695
    %v131 = vpow.pop %v130
    %vm132 = vcmask 64512
    %v133 = vsel %vm132, %v131, 0.0
    %134 = vadd.xlane.f32.xlu0 %v133
    %v135 = vpop.xlane.xlu0 %134
    %v136 = vlaneseq
    %v137 = vshrl.u32 %v136, 7
    %v138 = vlaneseq
    %v139 = vand.u32 %v138, 127
    %vm140 = vcmp.eq.s32.totalorder %v137, %v139
    %v141 = vsel %vm140, %v126, 0.0
    %v142 = vsel %vm132, %v141, 0.0
    %143 = vadd.xlane.f32.xlu0 %v142
    %v144 = vpop.xlane.xlu0 %143
    %v145 = vlog2.pop %v135
    %v146 = vmul.f32 %v145, 0.6931472
    %v147 = vadd.f32 %v146, 1.0
    %v148 = vsub.f32 %v147, %v144
    %v149 = vrot.slane %v148, 4
    %v150 = vadd.f32 %v148, %v149
    %v151 = vrot.slane %v150, 2
    %v152 = vadd.f32 %v150, %v151
    %v153 = vrot.slane %v152, 1
    %v154 = vadd.f32 %v152, %v153
    %v155 = vmul.f32 %v154, 0.125
    %vm156 = vcmask 0
    %157 = vst.msk [vmem:[#allocation7] sm:$0x1] %vm156, %v155
    // Predicated region
    $region18: #{tpu_custom_call.1} parent=1 // pred_check
      _
    $region19: #{tpu_custom_call.1} parent=1 // pred_check_branch
      %159 = sbr.rel (0) target = $region21
    $region20: #{tpu_custom_call.1} parent=1 // pred_region
      %s161 = ssub.s32 16, 16
      %162 = vsyncadd [#allocation4], %s161
      %s164 = sshll.u32 [#allocation7], 4
      %s165 = int_to_ptr.vmem [resolvable:$true] %s164
      %167 = dma.vmem_to_hbm [thread:$0]  %s165, 16, %s2, [#allocation4]
    $region21: #{tpu_custom_call.1} parent=1 // pred_fallthru
      _
    // Predicated region
    $region22: #{tpu_custom_call.1} parent=1 // pred_check
      _
    $region23: #{tpu_custom_call.1} parent=1 // pred_check_branch
      %169 = sbr.rel (0) target = $region25
    $region24: #{tpu_custom_call.1} parent=1 // pred_region
      %170 = dma.done [#allocation4], 16
    $region25: #{tpu_custom_call.1} parent=1 // pred_fallthru
      _
    %171 = vsyncpa [#allocation3], 1
    %172 = vsyncpa [#allocation6], 1
    %173 = vsyncpa [#allocation4], 1

</llo_original>
